<compile_context>
chip_gen: v5e
topology: v5e:2x2
jax: 0.10.0
libtpu: 0.0.40
codegen_flags: <defaults>
</compile_context>

<pallas_src>
import functools

import jax
import jax.numpy as jnp
from jax.experimental import pallas as pl
from jax.experimental.pallas import tpu as pltpu


def _up_conv_kernel(x_ref, w_ref, s_ref, t_ref, m_ref, o_ref, z_ref, p_ref,
                    *, h, w):
    """Fused Upsample(2x, nearest) + Conv3x3 + BN(eval) + ReLU (phase form).

    x_ref : (1, Cin, H*W)         original-resolution input, flat spatial
    w_ref : (4*Cout, 9*Cin)       per-phase effective weights (row = co*4+a*2+b)
    s_ref : (4*Cout, 1)           folded BN scale  (gamma / sqrt(var+eps))
    t_ref : (4*Cout, 1)           folded BN shift  (beta + (bias-mean)*scale)
    m_ref : (2, H*W)              column-validity masks for dc = -1 / +1
    o_ref : (1, 4*Cout, H*W)      phase-major output (untangled in the wrapper)
    z_ref : (Cin, H*W + 2*(W+1))  zero-padded flat input   (VMEM scratch)
    p_ref : (9*Cin, H*W)          im2col patch matrix      (VMEM scratch)
    """
    cin = x_ref.shape[1]
    hw = h * w
    pad = w + 1

    # Zero-padded flat copy of the input so every shifted window is a plain
    # (unaligned) lane slice -- no roll / reshape / OOB handling needed.
    z_ref[...] = jnp.zeros_like(z_ref)
    z_ref[:, pad:pad + hw] = x_ref[0]

    # im2col: 9 (dr, dc) shifted windows stacked along the contraction axis.
    tap = 0
    for dr in (-1, 0, 1):
        for dc in (-1, 0, 1):
            shift = dr * w + dc
            win = z_ref[:, pad + shift:pad + shift + hw]      # (Cin, H*W)
            if dc == -1:                                      # mask column wrap
                win = win * m_ref[0:1, :]
            elif dc == 1:
                win = win * m_ref[1:2, :]
            p_ref[tap * cin:(tap + 1) * cin, :] = win
            tap += 1

    # One fused MXU contraction over (tap, cin): (4*Cout, 9*Cin) @ (9*Cin, H*W)
    acc = jnp.dot(w_ref[...], p_ref[...], preferred_element_type=jnp.float32)

    # Folded conv-bias + eval-mode BatchNorm + ReLU; lane-dense f32 store.
    y = jnp.maximum(acc * s_ref[...] + t_ref[...], 0.0)
    o_ref[0] = y.astype(o_ref.dtype)


def up_conv_forward(x_nchw, w_oihw, b_conv, gamma, beta, run_mean, run_var,
                    eps=1e-5, compute_dtype=jnp.bfloat16):
    n, cin, h, w = x_nchw.shape
    cout = w_oihw.shape[0]
    hw = h * w

    # ---- free layout glue: keep NCHW, flatten spatial (metadata-only) -------
    x_flat = x_nchw.reshape(n, cin, hw).astype(compute_dtype)

    # ---- fold Upsample(2x, nearest) + conv3x3 into 4 phase kernels ----------
    # A[a, kh, dr+1] = 1 iff conv tap kh reads original-row offset dr for the
    # output-row phase a (a = output_row % 2); same matrix for columns.
    A = jnp.array([[[1., 0., 0.], [0., 1., 0.], [0., 1., 0.]],
                   [[0., 1., 0.], [0., 1., 0.], [0., 0., 1.]]], jnp.float32)
    weff = jnp.einsum('oikl,akr,blc->oabrci', w_oihw.astype(jnp.float32), A, A)
    w_all = weff.reshape(4 * cout, 9 * cin).astype(compute_dtype)

    # ---- fold conv bias + eval-mode BatchNorm into per-channel scale/shift --
    inv_std = 1.0 / jnp.sqrt(run_var + eps)
    scale = (gamma * inv_std).astype(jnp.float32)
    shift = (beta + (b_conv - run_mean) * gamma * inv_std).astype(jnp.float32)
    scale_all = jnp.repeat(scale, 4).reshape(4 * cout, 1)   # rows: co*4 + phase
    shift_all = jnp.repeat(shift, 4).reshape(4 * cout, 1)

    # ---- column-validity masks for the dc = -1 / +1 taps --------------------
    q = jnp.arange(hw, dtype=jnp.int32) % w
    colmask = jnp.stack([q >= 1, q <= w - 2]).astype(compute_dtype)  # (2, H*W)

    out_phase = pl.pallas_call(
        functools.partial(_up_conv_kernel, h=h, w=w),
        out_shape=jax.ShapeDtypeStruct((n, 4 * cout, hw), jnp.float32),
        grid_spec=pltpu.PrefetchScalarGridSpec(
            num_scalar_prefetch=0,
            grid=(n,),
            in_specs=[
                pl.BlockSpec((1, cin, hw), lambda b: (b, 0, 0)),
                pl.BlockSpec((4 * cout, 9 * cin), lambda b: (0, 0)),
                pl.BlockSpec((4 * cout, 1), lambda b: (0, 0)),
                pl.BlockSpec((4 * cout, 1), lambda b: (0, 0)),
                pl.BlockSpec((2, hw), lambda b: (0, 0)),
            ],
            out_specs=pl.BlockSpec((1, 4 * cout, hw), lambda b: (b, 0, 0)),
            scratch_shapes=[
                pltpu.VMEM((cin, hw + 2 * (w + 1)), compute_dtype),
                pltpu.VMEM((9 * cin, hw), compute_dtype),
            ],
        ),
        compiler_params=pltpu.CompilerParams(
            dimension_semantics=("parallel",),
            vmem_limit_bytes=32 * 1024 * 1024,
        ),
    )(x_flat, w_all, scale_all, shift_all, colmask)

    # ---- untangle phases: [n, co, a, b, p, q] -> [n, co, 2p+a, 2q+b] ---------
    out = out_phase.reshape(n, cout, 2, 2, h, w)       # free (split dims)
    out = jnp.transpose(out, (0, 1, 4, 2, 5, 3))       # one fused XLA pass
    return out.reshape(n, cout, 2 * h, 2 * w)          # free (merge dims)


def up_conv_reference(x_nchw, w_oihw, b_conv, gamma, beta, run_mean, run_var,
                      eps=1e-5):
    """Pure-JAX reference (same inference-mode BN semantics)."""
    x = jnp.transpose(x_nchw, (0, 2, 3, 1))
    x = jnp.repeat(jnp.repeat(x, 2, axis=1), 2, axis=2)
    w_hwio = jnp.transpose(w_oihw, (2, 3, 1, 0))
    y = jax.lax.conv_general_dilated(
        x, w_hwio, window_strides=(1, 1), padding=((1, 1), (1, 1)),
        dimension_numbers=("NHWC", "HWIO", "NHWC"))
    y = y + b_conv
    y = (y - run_mean) / jnp.sqrt(run_var + eps) * gamma + beta
    y = jnp.maximum(y, 0.0)
    return jnp.transpose(y, (0, 3, 1, 2))


if __name__ == "__main__":
    # small shapes consistent with the module: up_conv(ch_in=4, ch_out=8)
    N, CIN, COUT, H, W = 2, 4, 8, 16, 16

    key = jax.random.PRNGKey(0)
    k1, k2, k3, k4, k5, k6, k7 = jax.random.split(key, 7)

    x = jax.random.normal(k1, (N, CIN, H, W), jnp.float32)
    conv_w = jax.random.normal(k2, (COUT, CIN, 3, 3), jnp.float32) * 0.1
    conv_b = jax.random.normal(k3, (COUT,), jnp.float32) * 0.1
    bn_gamma = 1.0 + 0.1 * jax.random.normal(k4, (COUT,), jnp.float32)
    bn_beta = 0.1 * jax.random.normal(k5, (COUT,), jnp.float32)
    bn_mean = 0.05 * jax.random.normal(k6, (COUT,), jnp.float32)
    bn_var = jnp.abs(1.0 + 0.1 * jax.random.normal(k7, (COUT,), jnp.float32))

    ref = up_conv_reference(x, conv_w, conv_b, bn_gamma, bn_beta,
                            bn_mean, bn_var)

    # f32 path: strict check of the fused upsample/conv/BN/ReLU math
    out_f32 = jax.block_until_ready(
        up_conv_forward(x, conv_w, conv_b, bn_gamma, bn_beta, bn_mean, bn_var,
                        compute_dtype=jnp.float32))
    assert out_f32.shape == (N, COUT, 2 * H, 2 * W), out_f32.shape
    assert jnp.allclose(out_f32, ref, atol=2e-4, rtol=2e-4), \
        float(jnp.max(jnp.abs(out_f32 - ref)))

    # bf16 path (default): halved HBM/VMEM traffic, f32 accumulation on the MXU
    out_bf16 = jax.block_until_ready(
        up_conv_forward(x, conv_w, conv_b, bn_gamma, bn_beta, bn_mean, bn_var))
    assert out_bf16.shape == (N, COUT, 2 * H, 2 * W), out_bf16.shape
    assert jnp.allclose(out_bf16, ref, atol=3e-2, rtol=3e-2), \
        float(jnp.max(jnp.abs(out_bf16 - ref)))

    print("KERNEL_OK")
</pallas_src>

<mosaic_0001>
module attributes {stable_mosaic.version = 11 : i64} {
  func.func @_up_conv_kernel(%arg0: i32, %arg1: memref<1x4x256xf32, #tpu.memory_space<vmem>>, %arg2: memref<32x36xf32, #tpu.memory_space<vmem>>, %arg3: memref<32x1xf32, #tpu.memory_space<vmem>>, %arg4: memref<32x1xf32, #tpu.memory_space<vmem>>, %arg5: memref<2x256xf32, #tpu.memory_space<vmem>>, %arg6: memref<1x32x256xf32, #tpu.memory_space<vmem>>, %arg7: memref<4x290xf32, #tpu.memory_space<vmem>>, %arg8: memref<36x256xf32, #tpu.memory_space<vmem>>) attributes {dimension_semantics = [#tpu.dimension_semantics<parallel>], iteration_bounds = array<i64: 2>, scalar_prefetch = 0 : i64, scratch_operands = 2 : i64, tpu.core_type = #tpu.core_type<tc>, window_params = [{transform_indices = @transform_0, window_bounds = array<i64: 1, 4, 256>}, {pipeline_mode = #tpu.pipeline_mode<synchronous>, transform_indices = @transform_1, window_bounds = array<i64: 32, 36>}, {pipeline_mode = #tpu.pipeline_mode<synchronous>, transform_indices = @transform_2, window_bounds = array<i64: 32, 1>}, {pipeline_mode = #tpu.pipeline_mode<synchronous>, transform_indices = @transform_3, window_bounds = array<i64: 32, 1>}, {pipeline_mode = #tpu.pipeline_mode<synchronous>, transform_indices = @transform_4, window_bounds = array<i64: 2, 256>}, {transform_indices = @transform_5, window_bounds = array<i64: 1, 32, 256>}]} {
    %cst = arith.constant 0.000000e+00 : f32
    %0 = vector.broadcast %cst : f32 to vector<4x290xf32>
    %c0 = arith.constant 0 : index
    %c0_0 = arith.constant 0 : index
    %1 = vector.load %arg7[%c0, %c0_0] : memref<4x290xf32, #tpu.memory_space<vmem>>, vector<4x290xf32>
    tpu.vector_store %arg7[%c0, %c0_0], %0 {strides = array<i32>} : memref<4x290xf32, #tpu.memory_space<vmem>>, vector<4x290xf32>,
    %c0_1 = arith.constant 0 : index
    %c0_2 = arith.constant 0 : index
    %c0_3 = arith.constant 0 : index
    %2 = vector.load %arg1[%c0_1, %c0_2, %c0_3] : memref<1x4x256xf32, #tpu.memory_space<vmem>>, vector<1x4x256xf32>
    %3 = vector.shape_cast %2 : vector<1x4x256xf32> to vector<4x256xf32>
    %c0_4 = arith.constant 0 : index
    %c17 = arith.constant 17 : index
    %4 = vector.load %arg7[%c0_4, %c17] : memref<4x290xf32, #tpu.memory_space<vmem>>, vector<4x256xf32>
    tpu.vector_store %arg7[%c0_4, %c17], %3 {strides = array<i32>} : memref<4x290xf32, #tpu.memory_space<vmem>>, vector<4x256xf32>,
    %c0_5 = arith.constant 0 : index
    %c0_6 = arith.constant 0 : index
    %5 = vector.load %arg7[%c0_5, %c0_6] : memref<4x290xf32, #tpu.memory_space<vmem>>, vector<4x256xf32>
    %c0_7 = arith.constant 0 : index
    %c0_8 = arith.constant 0 : index
    %6 = vector.load %arg5[%c0_7, %c0_8] : memref<2x256xf32, #tpu.memory_space<vmem>>, vector<1x256xf32>
    %7 = vector.broadcast %6 : vector<1x256xf32> to vector<4x256xf32>
    %8 = arith.mulf %5, %7 : vector<4x256xf32>
    %c0_9 = arith.constant 0 : index
    %c0_10 = arith.constant 0 : index
    %9 = vector.load %arg8[%c0_9, %c0_10] : memref<36x256xf32, #tpu.memory_space<vmem>>, vector<4x256xf32>
    tpu.vector_store %arg8[%c0_9, %c0_10], %8 {strides = array<i32>} : memref<36x256xf32, #tpu.memory_space<vmem>>, vector<4x256xf32>,
    %c0_11 = arith.constant 0 : index
    %c1 = arith.constant 1 : index
    %10 = vector.load %arg7[%c0_11, %c1] : memref<4x290xf32, #tpu.memory_space<vmem>>, vector<4x256xf32>
    %c4 = arith.constant 4 : index
    %c0_12 = arith.constant 0 : index
    %11 = vector.load %arg8[%c4, %c0_12] : memref<36x256xf32, #tpu.memory_space<vmem>>, vector<4x256xf32>
    tpu.vector_store %arg8[%c4, %c0_12], %10 {strides = array<i32>} : memref<36x256xf32, #tpu.memory_space<vmem>>, vector<4x256xf32>,
    %c0_13 = arith.constant 0 : index
    %c2 = arith.constant 2 : index
    %12 = vector.load %arg7[%c0_13, %c2] : memref<4x290xf32, #tpu.memory_space<vmem>>, vector<4x256xf32>
    %c1_14 = arith.constant 1 : index
    %c0_15 = arith.constant 0 : index
    %13 = vector.load %arg5[%c1_14, %c0_15] : memref<2x256xf32, #tpu.memory_space<vmem>>, vector<1x256xf32>
    %14 = vector.broadcast %13 : vector<1x256xf32> to vector<4x256xf32>
    %15 = arith.mulf %12, %14 : vector<4x256xf32>
    %c8 = arith.constant 8 : index
    %c0_16 = arith.constant 0 : index
    %16 = vector.load %arg8[%c8, %c0_16] : memref<36x256xf32, #tpu.memory_space<vmem>>, vector<4x256xf32>
    tpu.vector_store %arg8[%c8, %c0_16], %15 {strides = array<i32>} : memref<36x256xf32, #tpu.memory_space<vmem>>, vector<4x256xf32>,
    %c0_17 = arith.constant 0 : index
    %c16 = arith.constant 16 : index
    %17 = vector.load %arg7[%c0_17, %c16] : memref<4x290xf32, #tpu.memory_space<vmem>>, vector<4x256xf32>
    %c0_18 = arith.constant 0 : index
    %c0_19 = arith.constant 0 : index
    %18 = vector.load %arg5[%c0_18, %c0_19] : memref<2x256xf32, #tpu.memory_space<vmem>>, vector<1x256xf32>
    %19 = vector.broadcast %18 : vector<1x256xf32> to vector<4x256xf32>
    %20 = arith.mulf %17, %19 : vector<4x256xf32>
    %c12 = arith.constant 12 : index
    %c0_20 = arith.constant 0 : index
    %21 = vector.load %arg8[%c12, %c0_20] : memref<36x256xf32, #tpu.memory_space<vmem>>, vector<4x256xf32>
    tpu.vector_store %arg8[%c12, %c0_20], %20 {strides = array<i32>} : memref<36x256xf32, #tpu.memory_space<vmem>>, vector<4x256xf32>,
    %c0_21 = arith.constant 0 : index
    %c17_22 = arith.constant 17 : index
    %22 = vector.load %arg7[%c0_21, %c17_22] : memref<4x290xf32, #tpu.memory_space<vmem>>, vector<4x256xf32>
    %c16_23 = arith.constant 16 : index
    %c0_24 = arith.constant 0 : index
    %23 = vector.load %arg8[%c16_23, %c0_24] : memref<36x256xf32, #tpu.memory_space<vmem>>, vector<4x256xf32>
    tpu.vector_store %arg8[%c16_23, %c0_24], %22 {strides = array<i32>} : memref<36x256xf32, #tpu.memory_space<vmem>>, vector<4x256xf32>,
    %c0_25 = arith.constant 0 : index
    %c18 = arith.constant 18 : index
    %24 = vector.load %arg7[%c0_25, %c18] : memref<4x290xf32, #tpu.memory_space<vmem>>, vector<4x256xf32>
    %c1_26 = arith.constant 1 : index
    %c0_27 = arith.constant 0 : index
    %25 = vector.load %arg5[%c1_26, %c0_27] : memref<2x256xf32, #tpu.memory_space<vmem>>, vector<1x256xf32>
    %26 = vector.broadcast %25 : vector<1x256xf32> to vector<4x256xf32>
    %27 = arith.mulf %24, %26 : vector<4x256xf32>
    %c20 = arith.constant 20 : index
    %c0_28 = arith.constant 0 : index
    %28 = vector.load %arg8[%c20, %c0_28] : memref<36x256xf32, #tpu.memory_space<vmem>>, vector<4x256xf32>
    tpu.vector_store %arg8[%c20, %c0_28], %27 {strides = array<i32>} : memref<36x256xf32, #tpu.memory_space<vmem>>, vector<4x256xf32>,
    %c0_29 = arith.constant 0 : index
    %c32 = arith.constant 32 : index
    %29 = vector.load %arg7[%c0_29, %c32] : memref<4x290xf32, #tpu.memory_space<vmem>>, vector<4x256xf32>
    %c0_30 = arith.constant 0 : index
    %c0_31 = arith.constant 0 : index
    %30 = vector.load %arg5[%c0_30, %c0_31] : memref<2x256xf32, #tpu.memory_space<vmem>>, vector<1x256xf32>
    %31 = vector.broadcast %30 : vector<1x256xf32> to vector<4x256xf32>
    %32 = arith.mulf %29, %31 : vector<4x256xf32>
    %c24 = arith.constant 24 : index
    %c0_32 = arith.constant 0 : index
    %33 = vector.load %arg8[%c24, %c0_32] : memref<36x256xf32, #tpu.memory_space<vmem>>, vector<4x256xf32>
    tpu.vector_store %arg8[%c24, %c0_32], %32 {strides = array<i32>} : memref<36x256xf32, #tpu.memory_space<vmem>>, vector<4x256xf32>,
    %c0_33 = arith.constant 0 : index
    %c33 = arith.constant 33 : index
    %34 = vector.load %arg7[%c0_33, %c33] : memref<4x290xf32, #tpu.memory_space<vmem>>, vector<4x256xf32>
    %c28 = arith.constant 28 : index
    %c0_34 = arith.constant 0 : index
    %35 = vector.load %arg8[%c28, %c0_34] : memref<36x256xf32, #tpu.memory_space<vmem>>, vector<4x256xf32>
    tpu.vector_store %arg8[%c28, %c0_34], %34 {strides = array<i32>} : memref<36x256xf32, #tpu.memory_space<vmem>>, vector<4x256xf32>,
    %c0_35 = arith.constant 0 : index
    %c34 = arith.constant 34 : index
    %36 = vector.load %arg7[%c0_35, %c34] : memref<4x290xf32, #tpu.memory_space<vmem>>, vector<4x256xf32>
    %c1_36 = arith.constant 1 : index
    %c0_37 = arith.constant 0 : index
    %37 = vector.load %arg5[%c1_36, %c0_37] : memref<2x256xf32, #tpu.memory_space<vmem>>, vector<1x256xf32>
    %38 = vector.broadcast %37 : vector<1x256xf32> to vector<4x256xf32>
    %39 = arith.mulf %36, %38 : vector<4x256xf32>
    %c32_38 = arith.constant 32 : index
    %c0_39 = arith.constant 0 : index
    %40 = vector.load %arg8[%c32_38, %c0_39] : memref<36x256xf32, #tpu.memory_space<vmem>>, vector<4x256xf32>
    tpu.vector_store %arg8[%c32_38, %c0_39], %39 {strides = array<i32>} : memref<36x256xf32, #tpu.memory_space<vmem>>, vector<4x256xf32>,
    %c0_40 = arith.constant 0 : index
    %c0_41 = arith.constant 0 : index
    %41 = vector.load %arg2[%c0_40, %c0_41] : memref<32x36xf32, #tpu.memory_space<vmem>>, vector<32x36xf32>
    %c0_42 = arith.constant 0 : index
    %c0_43 = arith.constant 0 : index
    %42 = vector.load %arg8[%c0_42, %c0_43] : memref<36x256xf32, #tpu.memory_space<vmem>>, vector<36x256xf32>
    %cst_44 = arith.constant dense<0.000000e+00> : vector<32x256xf32>
    %43 = tpu.matmul %41, %42, %cst_44 {dimension_numbers = #tpu.dot_dimension_numbers<[1], [0], [0], [1], [0, 0, 1, 1], [], []>} : vector<32x36xf32>, vector<36x256xf32>, vector<32x256xf32> -> vector<32x256xf32>
    %c0_45 = arith.constant 0 : index
    %c0_46 = arith.constant 0 : index
    %44 = vector.load %arg3[%c0_45, %c0_46] : memref<32x1xf32, #tpu.memory_space<vmem>>, vector<32x1xf32>
    %45 = vector.broadcast %44 : vector<32x1xf32> to vector<32x256xf32>
    %46 = arith.mulf %43, %45 : vector<32x256xf32>
    %c0_47 = arith.constant 0 : index
    %c0_48 = arith.constant 0 : index
    %47 = vector.load %arg4[%c0_47, %c0_48] : memref<32x1xf32, #tpu.memory_space<vmem>>, vector<32x1xf32>
    %48 = vector.broadcast %47 : vector<32x1xf32> to vector<32x256xf32>
    %49 = arith.addf %46, %48 : vector<32x256xf32>
    %cst_49 = arith.constant 0.000000e+00 : f32
    %50 = vector.broadcast %cst_49 : f32 to vector<32x256xf32>
    %51 = arith.maximumf %49, %50 : vector<32x256xf32>
    %c0_50 = arith.constant 0 : index
    %c0_51 = arith.constant 0 : index
    %c0_52 = arith.constant 0 : index
    %52 = vector.load %arg6[%c0_50, %c0_51, %c0_52] : memref<1x32x256xf32, #tpu.memory_space<vmem>>, vector<1x32x256xf32>
    %53 = vector.shape_cast %52 : vector<1x32x256xf32> to vector<32x256xf32>
    %54 = vector.shape_cast %51 : vector<32x256xf32> to vector<1x32x256xf32>
    tpu.vector_store %arg6[%c0_50, %c0_51, %c0_52], %54 {strides = array<i32>} : memref<1x32x256xf32, #tpu.memory_space<vmem>>, vector<1x32x256xf32>,
    return
  }
  func.func @transform_0(%arg0: i32) -> (i32, i32, i32) {
    %c0_i32 = arith.constant 0 : i32
    %c0_i32_0 = arith.constant 0 : i32
    %c0_i32_1 = arith.constant 0 : i32
    return %arg0, %c0_i32, %c0_i32_0 : i32, i32, i32
  }
  func.func @transform_1(%arg0: i32) -> (i32, i32) {
    %c0_i32 = arith.constant 0 : i32
    %c0_i32_0 = arith.constant 0 : i32
    %c0_i32_1 = arith.constant 0 : i32
    return %c0_i32, %c0_i32_0 : i32, i32
  }
  func.func @transform_2(%arg0: i32) -> (i32, i32) {
    %c0_i32 = arith.constant 0 : i32
    %c0_i32_0 = arith.constant 0 : i32
    %c0_i32_1 = arith.constant 0 : i32
    return %c0_i32, %c0_i32_0 : i32, i32
  }
  func.func @transform_3(%arg0: i32) -> (i32, i32) {
    %c0_i32 = arith.constant 0 : i32
    %c0_i32_0 = arith.constant 0 : i32
    %c0_i32_1 = arith.constant 0 : i32
    return %c0_i32, %c0_i32_0 : i32, i32
  }
  func.func @transform_4(%arg0: i32) -> (i32, i32) {
    %c0_i32 = arith.constant 0 : i32
    %c0_i32_0 = arith.constant 0 : i32
    %c0_i32_1 = arith.constant 0 : i32
    return %c0_i32, %c0_i32_0 : i32, i32
  }
  func.func @transform_5(%arg0: i32) -> (i32, i32, i32) {
    %c0_i32 = arith.constant 0 : i32
    %c0_i32_0 = arith.constant 0 : i32
    %c0_i32_1 = arith.constant 0 : i32
    return %arg0, %c0_i32, %c0_i32_0 : i32, i32, i32
  }
}

</mosaic_0001>

<llo_original>
// kernel: tpu_custom_call.1
$region0: #{tpu_custom_call.1}
  #allocation0 [shape = 'u32[]', space=smem, size = 0x4, offset = 0x4, fixed_abs, tag = 'smem constant byte address 0x4 - core index']
  #allocation1 [shape = 'u32[72,128]{1,0:T(1,128)}', space=vmem, size = 0x9000, scoped, tag = 'internal scratch']
  #allocation2 [shape = 'f32[4,290]{1,0:T(4,128)}', space=vmem, size = 0x1800, scoped, tag = 'scratch operand']
  #allocation3 [shape = 'f32[36,256]{1,0:T(8,128)}', space=vmem, size = 0xa000, scoped, tag = 'scratch operand']
  %s0 = inlined_call_operand.vmem [shape: f32[2,4,256], index: 0, kind: input, shape index: {}]
  %s1 = inlined_call_operand.vmem [shape: f32[32,36], index: 1, kind: input, shape index: {}]
  %s2 = inlined_call_operand.vmem [shape: f32[32,1], index: 2, kind: input, shape index: {}]
  %s3 = inlined_call_operand.vmem [shape: f32[32,1], index: 3, kind: input, shape index: {}]
  %s4 = inlined_call_operand.vmem [shape: f32[2,256], index: 4, kind: input, shape index: {}]
  %s5 = inlined_call_operand.hbm [shape: f32[2,32,256], index: 5, kind: output, shape index: {}]
  %s6 = sld [smem:[#allocation0]]
  $region53: #{tpu_custom_call.1} parent=0
    _
  %s8 = ssub.s32 1, %s6
  %s9 = scalar_select 0, %s8, %s6
  $region1: #{tpu_custom_call.1} parent=0
    #allocation4 [shape = 'u8[65536]{0}', space=vmem, size = 0x10000, scoped, tag = 'output window, operand 0']
    #allocation5 [shape = 's32[2]{0}', space=sflag, size = 0x8, scoped, tag = 'scoped memory for tpu_custom_call.1']
    %10 = vsyncpa [#allocation5], 0
    %s11 = scalar_lea.sflag [#allocation5], 1
    %12 = vsyncpa %s11, 0
    loop: start=0, step=1, limit=4
    $region2: #{tpu_custom_call.1} parent=1 // loop_pre_header
      _
    $region3: #{tpu_custom_call.1} parent=1 // loop_header
      %s14 = sphi 0, %s18
      %p15 = scmp.ge.s32.totalorder %s14, 4
      %s24 = sphi 0, %s26
      %s27 = sphi 0, %s24
      %s28 = sphi 0, %s27
      %s44 = sphi 0, %s28
      %s48 = sphi 0, %s48
      %s50 = sphi 0, %s48
      %s51 = sphi 0, %s50
      %s65 = sphi 0, %s51
      %s69 = sphi 0, %s69
      %s71 = sphi 0, %s69
      %s72 = sphi 0, %s71
      %s86 = sphi 0, %s72
      %s90 = sphi 0, %s90
      %s92 = sphi 0, %s90
      %s93 = sphi 0, %s92
      %s107 = sphi 0, %s93
      %s111 = sphi 0, %s111
      %s113 = sphi 0, %s111
      %s114 = sphi 0, %s113
      %s128 = sphi 0, %s114
      %s134 = sphi 0, %s136
      %s137 = sphi 0, %s134
      %s138 = sphi 0, %s137
      %s154 = sphi 0, %s138
    $region4: #{tpu_custom_call.1} parent=1 // loop_header_branch
      %17 = sbr.rel (%p15) target = $region8
    $region5: #{tpu_custom_call.1} parent=1 // loop_body
      %s19 = ssub.s32 %s14, 1
      %s20 = ssub.s32 %s14, 2
      %s21 = sadd.s32 %s14, 1
      %s22 = ssub.s32 %s14, %s21
      %p23 = scmp.eq.s32.totalorder %s22, 0
      %s25 = sadd.s32 %s24, 1
      %s26 = scalar_select %p23, %s24, %s25
      %p29 = pneg %p23
      %p30 = scmp.eq.s32.totalorder %s14, 1
      %p31 = por %p29, %p30
      %p32 = scmp.ne.s32.totalorder %s24, %s27
      %p33 = scmp.eq.s32.totalorder %s14, 0
      %p34 = por %p32, %p33
      %p35 = scmp.ne.s32.totalorder %s24, %s27
      %p36 = scmp.eq.s32.totalorder %s19, 1
      %p37 = por %p35, %p36
      %p38 = scmp.ne.s32.totalorder %s27, %s28
      %p39 = scmp.eq.s32.totalorder %s19, 0
      %p40 = por %p38, %p39
      %p41 = scmp.ne.s32.totalorder %s27, %s28
      %p42 = scmp.eq.s32.totalorder %s20, 1
      %p43 = por %p41, %p42
      %p45 = scmp.ne.s32.totalorder %s28, %s44
      %p46 = scmp.eq.s32.totalorder %s20, 0
      %p47 = por %p45, %p46
      %s49 = sadd.s32 %s48, 1
      %p52 = scmp.eq.s32.totalorder %s14, 1
      %p53 = scmp.ne.s32.totalorder %s48, %s50
      %p54 = scmp.eq.s32.totalorder %s14, 0
      %p55 = por %p53, %p54
      %p56 = scmp.ne.s32.totalorder %s48, %s50
      %p57 = scmp.eq.s32.totalorder %s19, 1
      %p58 = por %p56, %p57
      %p59 = scmp.ne.s32.totalorder %s50, %s51
      %p60 = scmp.eq.s32.totalorder %s19, 0
      %p61 = por %p59, %p60
      %p62 = scmp.ne.s32.totalorder %s50, %s51
      %p63 = scmp.eq.s32.totalorder %s20, 1
      %p64 = por %p62, %p63
      %p66 = scmp.ne.s32.totalorder %s51, %s65
      %p67 = scmp.eq.s32.totalorder %s20, 0
      %p68 = por %p66, %p67
      %s70 = sadd.s32 %s69, 1
      %p73 = scmp.eq.s32.totalorder %s14, 1
      %p74 = scmp.ne.s32.totalorder %s69, %s71
      %p75 = scmp.eq.s32.totalorder %s14, 0
      %p76 = por %p74, %p75
      %p77 = scmp.ne.s32.totalorder %s69, %s71
      %p78 = scmp.eq.s32.totalorder %s19, 1
      %p79 = por %p77, %p78
      %p80 = scmp.ne.s32.totalorder %s71, %s72
      %p81 = scmp.eq.s32.totalorder %s19, 0
      %p82 = por %p80, %p81
      %p83 = scmp.ne.s32.totalorder %s71, %s72
      %p84 = scmp.eq.s32.totalorder %s20, 1
      %p85 = por %p83, %p84
      %p87 = scmp.ne.s32.totalorder %s72, %s86
      %p88 = scmp.eq.s32.totalorder %s20, 0
      %p89 = por %p87, %p88
      %s91 = sadd.s32 %s90, 1
      %p94 = scmp.eq.s32.totalorder %s14, 1
      %p95 = scmp.ne.s32.totalorder %s90, %s92
      %p96 = scmp.eq.s32.totalorder %s14, 0
      %p97 = por %p95, %p96
      %p98 = scmp.ne.s32.totalorder %s90, %s92
      %p99 = scmp.eq.s32.totalorder %s19, 1
      %p100 = por %p98, %p99
      %p101 = scmp.ne.s32.totalorder %s92, %s93
      %p102 = scmp.eq.s32.totalorder %s19, 0
      %p103 = por %p101, %p102
      %p104 = scmp.ne.s32.totalorder %s92, %s93
      %p105 = scmp.eq.s32.totalorder %s20, 1
      %p106 = por %p104, %p105
      %p108 = scmp.ne.s32.totalorder %s93, %s107
      %p109 = scmp.eq.s32.totalorder %s20, 0
      %p110 = por %p108, %p109
      %s112 = sadd.s32 %s111, 1
      %p115 = scmp.eq.s32.totalorder %s14, 1
      %p116 = scmp.ne.s32.totalorder %s111, %s113
      %p117 = scmp.eq.s32.totalorder %s14, 0
      %p118 = por %p116, %p117
      %p119 = scmp.ne.s32.totalorder %s111, %s113
      %p120 = scmp.eq.s32.totalorder %s19, 1
      %p121 = por %p119, %p120
      %p122 = scmp.ne.s32.totalorder %s113, %s114
      %p123 = scmp.eq.s32.totalorder %s19, 0
      %p124 = por %p122, %p123
      %p125 = scmp.ne.s32.totalorder %s113, %s114
      %p126 = scmp.eq.s32.totalorder %s20, 1
      %p127 = por %p125, %p126
      %p129 = scmp.ne.s32.totalorder %s114, %s128
      %p130 = scmp.eq.s32.totalorder %s20, 0
      %p131 = por %p129, %p130
      %s132 = ssub.s32 %s14, %s21
      %p133 = scmp.eq.s32.totalorder %s132, 0
      %s135 = sadd.s32 %s134, 1
      %s136 = scalar_select %p133, %s134, %s135
      %p139 = pneg %p133
      %p140 = scmp.eq.s32.totalorder %s14, 1
      %p141 = por %p139, %p140
      %p142 = scmp.ne.s32.totalorder %s134, %s137
      %p143 = scmp.eq.s32.totalorder %s14, 0
      %p144 = por %p142, %p143
      %p145 = scmp.ne.s32.totalorder %s134, %s137
      %p146 = scmp.eq.s32.totalorder %s19, 1
      %p147 = por %p145, %p146
      %p148 = scmp.ne.s32.totalorder %s137, %s138
      %p149 = scmp.eq.s32.totalorder %s19, 0
      %p150 = por %p148, %p149
      %p151 = scmp.ne.s32.totalorder %s137, %s138
      %p152 = scmp.eq.s32.totalorder %s20, 1
      %p153 = por %p151, %p152
      %p155 = scmp.ne.s32.totalorder %s138, %s154
      %p156 = scmp.eq.s32.totalorder %s20, 0
      %p157 = por %p155, %p156
      %p158 = scmp.le.s32.totalorder 1, %s14
      %p159 = scmp.lt.s32.totalorder %s14, 3
      %p160 = pnand %p158, %p159
      %p161 = pneg %p160
      // Predicated region
      $region9: #{tpu_custom_call.1} parent=5 // pred_check
        _
      $region10: #{tpu_custom_call.1} parent=5 // pred_check_branch
        %163 = sbr.rel (%p160) target = $region12
      $region11: #{tpu_custom_call.1} parent=5 // pred_region
        %s164 = ssub.s32 %s14, 1
        // Predicated region
        $region13: #{tpu_custom_call.1} parent=11 // pred_check
          %p165 = pneg %p61
        $region14: #{tpu_custom_call.1} parent=11 // pred_check_branch
          %167 = sbr.rel (%p165) target = $region16
        $region15: #{tpu_custom_call.1} parent=11 // pred_region
          _
        $region16: #{tpu_custom_call.1} parent=11 // pred_fallthru
          _
        // Predicated region
        $region17: #{tpu_custom_call.1} parent=11 // pred_check
          %p168 = pneg %p82
        $region18: #{tpu_custom_call.1} parent=11 // pred_check_branch
          %170 = sbr.rel (%p168) target = $region20
        $region19: #{tpu_custom_call.1} parent=11 // pred_region
          _
        $region20: #{tpu_custom_call.1} parent=11 // pred_fallthru
          _
        // Predicated region
        $region21: #{tpu_custom_call.1} parent=11 // pred_check
          %p171 = pneg %p103
        $region22: #{tpu_custom_call.1} parent=11 // pred_check_branch
          %173 = sbr.rel (%p171) target = $region24
        $region23: #{tpu_custom_call.1} parent=11 // pred_region
          _
        $region24: #{tpu_custom_call.1} parent=11 // pred_fallthru
          _
        // Predicated region
        $region25: #{tpu_custom_call.1} parent=11 // pred_check
          %p174 = pneg %p124
        $region26: #{tpu_custom_call.1} parent=11 // pred_check_branch
          %176 = sbr.rel (%p174) target = $region28
        $region27: #{tpu_custom_call.1} parent=11 // pred_region
          _
        $region28: #{tpu_custom_call.1} parent=11 // pred_fallthru
          _
      $region12: #{tpu_custom_call.1} parent=5 // pred_fallthru
        _
      %p177 = scmp.lt.s32.totalorder %s14, 2
      // Predicated region
      $region29: #{tpu_custom_call.1} parent=5 // pred_check
        %p178 = pneg %p177
      $region30: #{tpu_custom_call.1} parent=5 // pred_check_branch
        %180 = sbr.rel (%p178) target = $region32
      $region31: #{tpu_custom_call.1} parent=5 // pred_region
        // Predicated region
        $region33: #{tpu_custom_call.1} parent=31 // pred_check
          %p181 = pneg %p34
        $region34: #{tpu_custom_call.1} parent=31 // pred_check_branch
          %183 = sbr.rel (%p181) target = $region36
        $region35: #{tpu_custom_call.1} parent=31 // pred_region
          %p184 = scmp.lt.s32.totalorder %s14, 1
          %s185 = scalar_select %p184, %s14, 1
          %s186 = smul.addr %s185, 2
          %s187 = smul.addr %s186, 4
          %s188 = scalar_lea.vmem %s0, %s187
        $region36: #{tpu_custom_call.1} parent=31 // pred_fallthru
          _
      $region32: #{tpu_custom_call.1} parent=5 // pred_fallthru
        _
      %p189 = scmp.le.s32.totalorder 1, %s14
      %p190 = scmp.lt.s32.totalorder %s14, 3
      %p191 = pnand %p189, %p190
      %p192 = pneg %p191
      // Predicated region
      $region37: #{tpu_custom_call.1} parent=5 // pred_check
        _
      $region38: #{tpu_custom_call.1} parent=5 // pred_check_branch
        %194 = sbr.rel (%p191) target = $region40
      $region39: #{tpu_custom_call.1} parent=5 // pred_region
        %s195 = ssub.s32 %s14, 1
        %p196 = scmp.lt.s32.totalorder %s19, 1
        %s197 = scalar_select %p196, %s19, 1
        %s198 = smul.addr %s197, 2
        %s199 = smul.addr %s198, 4
        %s200 = scalar_lea.vmem %s0, %s199
        %p201 = pneg %p40
        %p202 = pneg %p37
        %p203 = pneg %p61
        %p204 = pneg %p58
        %p205 = pneg %p82
        %p206 = pneg %p79
        %p207 = pneg %p103
        %p208 = pneg %p100
        %p209 = pneg %p124
        %p210 = pneg %p121
        %p211 = pneg %p150
        %p212 = pneg %p147
        %s213 = sand.u32 %s137, 1
        %s214 = scalar_lea.sflag [#allocation5], %s213
        %s215 = sand.u32 %s137, 1
        %s216 = smul.addr %s215, 64
        %s217 = scalar_lea.vmem [#allocation4], %s216
        %p218 = scmp.lt.s32.totalorder %s19, 1
        %s219 = scalar_select %p218, %s19, 1
        %s220 = smul.addr %s219, 2
        %s221 = smul.addr %s220, 4
        %s222 = scalar_lea.vmem %s0, %s221
        %223 = vst [vmem:[#allocation2] sm:$0xff] 0.0
        %vm224 = vcmask 273408
        %225 = vst.msk [vmem:[#allocation2 + $0x8] sm:$0xf] %vm224, 0.0
        %v226 = vld [vmem:[%s222] sm:$0xff]
        %228 = vrot.lane.b32.xlu0 %v226, 17
        %v229 = vpop.permute.xlu0 %228
        %v230 = vrot.slane %v229, 4
        %vm231 = vcmask 138240
        %v232 = vsel %vm231, %v230, %v229
        %vm235 = vcmask 1043592
        %vm236 = vcmask 1047556
        %vm237 = vmor %vm236, %vm235
        %238 = vst.msk [vmem:[#allocation2] sm:$0xff] %vm237, %v232
        %vm239 = vcmask 134144
        %240 = vst.msk [vmem:[#allocation2 + $0x8] sm:$0xf] %vm239, %v230
        %v241 = vld [vmem:[#allocation2] sm:$0xff]
        %v242 = vld [vmem:[%s4] ss:$2 sm:$0x3]
        %v244 = vperm.slane %v242, 0
        %v245 = vperm.slane %v242, 1
        %v246 = vrot.slane %v245, 4
        %vm247 = vcmask 1043456
        %v248 = vsel %vm247, %v244, %v246
        %v250 = vmul.f32 %v241, %v248
        %252 = vst [vmem:[#allocation1] ss:$2 sm:$0xff] %v250
        %v253 = vld.sshfl [vmem:[#allocation1] sm:$0xff pattern:$0x75316420]
        %v254 = vld.sshfl [vmem:[#allocation1 + $0x8] sm:$0xff pattern:$0x75316420]
        %257 = vst [vmem:[#allocation3] sm:$0xf] %v253
        %258 = vst [vmem:[#allocation3 + $0x8] sm:$0xf] %v254
        %v259 = vld [vmem:[#allocation2] sm:$0xff]
        %v260 = vld [vmem:[#allocation2 + $0x8] sm:$0xf]
        %s263 = scalar_lea.vmem [#allocation1], 1
        %264 = vst [vmem:[%s263] ss:$2 sm:$0xff] %v259
        %s265 = scalar_lea.vmem [#allocation1], 17
        %266 = vst [vmem:[%s265] ss:$2 sm:$0xff] %v260
        %v267 = vld.sshfl [vmem:[#allocation1] sm:$0xff pattern:$0x75316420]
        %v268 = vld.sshfl [vmem:[#allocation1 + $0x8] sm:$0xff pattern:$0x75316420]
        %v269 = vld.sshfl [vmem:[#allocation1 + $0x10] sm:$0xff pattern:$0x75316420]
        %270 = vrot.lane.b32.xlu0 %v267, 127
        %v271 = vpop.permute.xlu0 %270
        %272 = vrot.lane.b32.xlu0 %v268, 127
        %v273 = vpop.permute.xlu0 %272
        %274 = vrot.lane.b32.xlu0 %v269, 127
        %v275 = vpop.permute.xlu0 %274
        %vm276 = vcmask 1039360
        %v277 = vsel %vm276, %v271, %v273
        %v278 = vsel %vm276, %v273, %v275
        %281 = vst [vmem:[#allocation3] sm:$0xf0] %v277
        %282 = vst [vmem:[#allocation3 + $0x8] sm:$0xf0] %v278
        %v283 = vld [vmem:[#allocation2] sm:$0xff]
        %v284 = vld [vmem:[#allocation2 + $0x8] sm:$0xf]
        %s285 = scalar_lea.vmem %s4, 1
        %v286 = vld [vmem:[%s285] ss:$2 sm:$0x3]
        %v288 = vperm.slane %v286, 0
        %v289 = vperm.slane %v286, 1
        %v290 = vrot.slane %v289, 4
        %v291 = vsel %vm247, %v288, %v290
        %292 = vrot.lane.b32.xlu0 %v291, 2
        %v293 = vpop.permute.xlu0 %292
        %v294 = vrot.slane %v293, 4
        %vm295 = vcmask 15360
        %v296 = vsel %vm295, %v294, %v293
        %v299 = vmul.f32 %v283, %v296
        %v300 = vmul.f32 %v284, %v294
        %303 = vst [vmem:[#allocation1] ss:$2 sm:$0xff] %v299
        %s304 = scalar_lea.vmem [#allocation1], 16
        %305 = vst [vmem:[%s304] ss:$2 sm:$0xff] %v300
        %v306 = vld.sshfl [vmem:[#allocation1] sm:$0xff pattern:$0x75316420]
        %v307 = vld.sshfl [vmem:[#allocation1 + $0x8] sm:$0xff pattern:$0x75316420]
        %v308 = vld.sshfl [vmem:[#allocation1 + $0x10] sm:$0xff pattern:$0x75316420]
        %309 = vrot.lane.b32.xlu0 %v306, 126
        %v310 = vpop.permute.xlu0 %309
        %311 = vrot.lane.b32.xlu0 %v307, 126
        %v312 = vpop.permute.xlu0 %311
        %313 = vrot.lane.b32.xlu0 %v308, 126
        %v314 = vpop.permute.xlu0 %313
        %vm315 = vcmask 1031168
        %v316 = vsel %vm315, %v310, %v312
        %v317 = vsel %vm315, %v312, %v314
        %320 = vst [vmem:[#allocation3 + $0x10] sm:$0xf] %v316
        %321 = vst [vmem:[#allocation3 + $0x18] sm:$0xf] %v317
        %v322 = vld [vmem:[#allocation2] sm:$0xff]
        %v323 = vld [vmem:[#allocation2 + $0x8] sm:$0xf]
        %v324 = vld [vmem:[%s4] ss:$2 sm:$0x3]
        %v326 = vperm.slane %v324, 0
        %v327 = vperm.slane %v324, 1
        %v328 = vrot.slane %v327, 4
        %v329 = vsel %vm247, %v326, %v328
        %330 = vrot.lane.b32.xlu0 %v329, 16
        %v331 = vpop.permute.xlu0 %330
        %v332 = vrot.slane %v331, 4
        %vm333 = vcmask 130048
        %v334 = vsel %vm333, %v332, %v331
        %v337 = vmul.f32 %v322, %v334
        %v338 = vmul.f32 %v323, %v332
        %s341 = scalar_lea.vmem [#allocation1], 1
        %342 = vst [vmem:[%s341] ss:$2 sm:$0xff] %v337
        %s343 = scalar_lea.vmem [#allocation1], 17
        %344 = vst [vmem:[%s343] ss:$2 sm:$0xff] %v338
        %v345 = vld.sshfl [vmem:[#allocation1] sm:$0xff pattern:$0x75316420]
        %v346 = vld.sshfl [vmem:[#allocation1 + $0x8] sm:$0xff pattern:$0x75316420]
        %v347 = vld.sshfl [vmem:[#allocation1 + $0x10] sm:$0xff pattern:$0x75316420]
        %348 = vrot.lane.b32.xlu0 %v345, 112
        %v349 = vpop.permute.xlu0 %348
        %350 = vrot.lane.b32.xlu0 %v346, 112
        %v351 = vpop.permute.xlu0 %350
        %352 = vrot.lane.b32.xlu0 %v347, 112
        %v353 = vpop.permute.xlu0 %352
        %vm354 = vcmask 916480
        %v355 = vsel %vm354, %v349, %v351
        %v356 = vsel %vm354, %v351, %v353
        %359 = vst [vmem:[#allocation3 + $0x10] sm:$0xf0] %v355
        %360 = vst [vmem:[#allocation3 + $0x18] sm:$0xf0] %v356
        %v361 = vld [vmem:[#allocation2] sm:$0xff]
        %v362 = vld [vmem:[#allocation2 + $0x8] sm:$0xf]
        %365 = vst [vmem:[#allocation1] ss:$2 sm:$0xff] %v361
        %s366 = scalar_lea.vmem [#allocation1], 16
        %367 = vst [vmem:[%s366] ss:$2 sm:$0xff] %v362
        %v368 = vld.sshfl [vmem:[#allocation1] sm:$0xff pattern:$0x75316420]
        %v369 = vld.sshfl [vmem:[#allocation1 + $0x8] sm:$0xff pattern:$0x75316420]
        %v370 = vld.sshfl [vmem:[#allocation1 + $0x10] sm:$0xff pattern:$0x75316420]
        %371 = vrot.lane.b32.xlu0 %v368, 111
        %v372 = vpop.permute.xlu0 %371
        %373 = vrot.lane.b32.xlu0 %v369, 111
        %v374 = vpop.permute.xlu0 %373
        %375 = vrot.lane.b32.xlu0 %v370, 111
        %v376 = vpop.permute.xlu0 %375
        %vm377 = vcmask 908288
        %v378 = vsel %vm377, %v372, %v374
        %v379 = vsel %vm377, %v374, %v376
        %382 = vst [vmem:[#allocation3 + $0x20] sm:$0xf] %v378
        %383 = vst [vmem:[#allocation3 + $0x28] sm:$0xf] %v379
        %v384 = vld [vmem:[#allocation2] sm:$0xff]
        %v385 = vld [vmem:[#allocation2 + $0x8] sm:$0xf]
        %v386 = vld [vmem:[%s285] ss:$2 sm:$0x3]
        %v388 = vperm.slane %v386, 0
        %v389 = vperm.slane %v386, 1
        %v390 = vrot.slane %v389, 4
        %v391 = vsel %vm247, %v388, %v390
        %392 = vrot.lane.b32.xlu0 %v391, 18
        %v393 = vpop.permute.xlu0 %392
        %v394 = vrot.slane %v393, 4
        %vm395 = vcmask 146432
        %v396 = vsel %vm395, %v394, %v393
        %v399 = vmul.f32 %v384, %v396
        %v400 = vmul.f32 %v385, %v394
        %s403 = scalar_lea.vmem [#allocation1], 1
        %404 = vst [vmem:[%s403] ss:$2 sm:$0xff] %v399
        %s405 = scalar_lea.vmem [#allocation1], 17
        %406 = vst [vmem:[%s405] ss:$2 sm:$0xff] %v400
        %v407 = vld.sshfl [vmem:[#allocation1] sm:$0xff pattern:$0x75316420]
        %v408 = vld.sshfl [vmem:[#allocation1 + $0x8] sm:$0xff pattern:$0x75316420]
        %v409 = vld.sshfl [vmem:[#allocation1 + $0x10] sm:$0xff pattern:$0x75316420]
        %410 = vrot.lane.b32.xlu0 %v407, 110
        %v411 = vpop.permute.xlu0 %410
        %412 = vrot.lane.b32.xlu0 %v408, 110
        %v413 = vpop.permute.xlu0 %412
        %414 = vrot.lane.b32.xlu0 %v409, 110
        %v415 = vpop.permute.xlu0 %414
        %vm416 = vcmask 900096
        %v417 = vsel %vm416, %v411, %v413
        %v418 = vsel %vm416, %v413, %v415
        %421 = vst [vmem:[#allocation3 + $0x20] sm:$0xf0] %v417
        %422 = vst [vmem:[#allocation3 + $0x28] sm:$0xf0] %v418
        %v423 = vld [vmem:[#allocation2] sm:$0xff]
        %v424 = vld [vmem:[#allocation2 + $0x8] sm:$0xf]
        %v425 = vld [vmem:[%s4] ss:$2 sm:$0x3]
        %v427 = vperm.slane %v425, 0
        %v428 = vperm.slane %v425, 1
        %v429 = vrot.slane %v428, 4
        %v430 = vsel %vm247, %v427, %v429
        %431 = vrot.lane.b32.xlu0 %v430, 32
        %v432 = vpop.permute.xlu0 %431
        %v433 = vrot.slane %v432, 4
        %vm434 = vcmask 261120
        %v435 = vsel %vm434, %v433, %v432
        %v438 = vmul.f32 %v423, %v435
        %v439 = vmul.f32 %v424, %v433
        %442 = vst [vmem:[#allocation1] ss:$2 sm:$0xff] %v438
        %s443 = scalar_lea.vmem [#allocation1], 16
        %444 = vst [vmem:[%s443] ss:$2 sm:$0xff] %v439
        %v445 = vld.sshfl [vmem:[#allocation1] sm:$0xff pattern:$0x75316420]
        %v446 = vld.sshfl [vmem:[#allocation1 + $0x8] sm:$0xff pattern:$0x75316420]
        %v447 = vld.sshfl [vmem:[#allocation1 + $0x10] sm:$0xff pattern:$0x75316420]
        %448 = vrot.lane.b32.xlu0 %v445, 96
        %v449 = vpop.permute.xlu0 %448
        %450 = vrot.lane.b32.xlu0 %v446, 96
        %v451 = vpop.permute.xlu0 %450
        %452 = vrot.lane.b32.xlu0 %v447, 96
        %v453 = vpop.permute.xlu0 %452
        %vm454 = vcmask 785408
        %v455 = vsel %vm454, %v449, %v451
        %v456 = vsel %vm454, %v451, %v453
        %459 = vst [vmem:[#allocation3 + $0x30] sm:$0xf] %v455
        %460 = vst [vmem:[#allocation3 + $0x38] sm:$0xf] %v456
        %v461 = vld [vmem:[#allocation2] sm:$0xff]
        %v462 = vld [vmem:[#allocation2 + $0x8] sm:$0xf]
        %s465 = scalar_lea.vmem [#allocation1], 1
        %466 = vst [vmem:[%s465] ss:$2 sm:$0xff] %v461
        %s467 = scalar_lea.vmem [#allocation1], 17
        %468 = vst [vmem:[%s467] ss:$2 sm:$0xff] %v462
        %v469 = vld.sshfl [vmem:[#allocation1] sm:$0xff pattern:$0x75316420]
        %v470 = vld.sshfl [vmem:[#allocation1 + $0x8] sm:$0xff pattern:$0x75316420]
        %v471 = vld.sshfl [vmem:[#allocation1 + $0x10] sm:$0xff pattern:$0x75316420]
        %472 = vrot.lane.b32.xlu0 %v469, 95
        %v473 = vpop.permute.xlu0 %472
        %474 = vrot.lane.b32.xlu0 %v470, 95
        %v475 = vpop.permute.xlu0 %474
        %476 = vrot.lane.b32.xlu0 %v471, 95
        %v477 = vpop.permute.xlu0 %476
        %vm478 = vcmask 777216
        %v479 = vsel %vm478, %v473, %v475
        %v480 = vsel %vm478, %v475, %v477
        %483 = vst [vmem:[#allocation3 + $0x30] sm:$0xf0] %v479
        %484 = vst [vmem:[#allocation3 + $0x38] sm:$0xf0] %v480
        %v485 = vld [vmem:[#allocation2] sm:$0xff]
        %v486 = vld [vmem:[#allocation2 + $0x8] sm:$0xf]
        %v487 = vld [vmem:[%s285] ss:$2 sm:$0x3]
        %v489 = vperm.slane %v487, 0
        %v490 = vperm.slane %v487, 1
        %v491 = vrot.slane %v490, 4
        %v492 = vsel %vm247, %v489, %v491
        %493 = vrot.lane.b32.xlu0 %v492, 34
        %v494 = vpop.permute.xlu0 %493
        %v495 = vrot.slane %v494, 4
        %vm496 = vcmask 277504
        %v497 = vsel %vm496, %v495, %v494
        %v500 = vmul.f32 %v485, %v497
        %v501 = vmul.f32 %v486, %v495
        %504 = vst [vmem:[#allocation1] ss:$2 sm:$0xff] %v500
        %s505 = scalar_lea.vmem [#allocation1], 16
        %506 = vst [vmem:[%s505] ss:$2 sm:$0xff] %v501
        %v507 = vld.sshfl [vmem:[#allocation1] sm:$0xff pattern:$0x75316420]
        %v508 = vld.sshfl [vmem:[#allocation1 + $0x8] sm:$0xff pattern:$0x75316420]
        %v509 = vld.sshfl [vmem:[#allocation1 + $0x10] sm:$0xff pattern:$0x75316420]
        %510 = vrot.lane.b32.xlu0 %v507, 94
        %v511 = vpop.permute.xlu0 %510
        %512 = vrot.lane.b32.xlu0 %v508, 94
        %v513 = vpop.permute.xlu0 %512
        %514 = vrot.lane.b32.xlu0 %v509, 94
        %v515 = vpop.permute.xlu0 %514
        %vm516 = vcmask 769024
        %v517 = vsel %vm516, %v511, %v513
        %v518 = vsel %vm516, %v513, %v515
        %521 = vst [vmem:[#allocation3 + $0x40] sm:$0xf] %v517
        %522 = vst [vmem:[#allocation3 + $0x48] sm:$0xf] %v518
        %v523 = vld [vmem:[%s1] sm:$0xff]
        %v524 = vld [vmem:[%s1 + $0x8] sm:$0xff]
        %v525 = vld [vmem:[%s1 + $0x10] sm:$0xff]
        %v526 = vld [vmem:[%s1 + $0x18] sm:$0xff]
        %v527 = vld [vmem:[#allocation3] sm:$0xff]
        %v528 = vld [vmem:[#allocation3 + $0x8] sm:$0xff]
        %v529 = vld [vmem:[#allocation3 + $0x10] sm:$0xff]
        %v530 = vld [vmem:[#allocation3 + $0x18] sm:$0xff]
        %v531 = vld [vmem:[#allocation3 + $0x20] sm:$0xff]
        %v532 = vld [vmem:[#allocation3 + $0x28] sm:$0xff]
        %v533 = vld [vmem:[#allocation3 + $0x30] sm:$0xff]
        %v534 = vld [vmem:[#allocation3 + $0x38] sm:$0xff]
        %v535 = vld [vmem:[#allocation3 + $0x40] sm:$0xf]
        %v536 = vld [vmem:[#allocation3 + $0x48] sm:$0xf]
        %vm537 = vcmask 293888
        %v539 = vsel %vm537, %v523, 0
        %v542 = vsel %vm537, %v524, 0
        %v545 = vsel %vm537, %v525, 0
        %v548 = vsel %vm537, %v526, 0
        %v551 = vsel %vm247, %v535, 0
        %v554 = vsel %vm247, %v536, 0
        %556 = vmatpush.msra.mxu0 0.0
        %557 = vmatpush.msra.mxu0 0.0
        %558 = vmatpush.msra.mxu0 0.0
        %559 = vmatpush.msra.mxu0 0.0
        %560 = vmatpush.msra.mxu0 0.0
        %561 = vmatpush.msra.mxu0 0.0
        %562 = vmatpush.msra.mxu0 0.0
        %563 = vmatpush.msra.mxu0 0.0
        %564 = vmatpush.msra.mxu0 0.0
        %565 = vmatpush.msra.mxu0 0.0
        %566 = vmatpush.msra.mxu0 0.0
        %567 = vmatpush.msra.mxu0 %v551
        %568 = vmatpush.msra.mxu0 %v533
        %569 = vmatpush.msra.mxu0 %v531
        %570 = vmatpush.msra.mxu0 %v529
        %571 = vmatpush.msra.mxu0 %v527
        %572 = vmatmul.f32.gmra.mxu0 %v539
        %v573 = vpop.f32.mrf.mxu0
        %v574 = vadd.f32 0.0, %v573
        %575 = vmatmul.f32.gmra.mxu0 %v542
        %v576 = vpop.f32.mrf.mxu0
        %v577 = vadd.f32 0.0, %v576
        %578 = vmatmul.f32.gmra.mxu0 %v545
        %v579 = vpop.f32.mrf.mxu0
        %v580 = vadd.f32 0.0, %v579
        %581 = vmatmul.f32.gmra.mxu0 %v548
        %v582 = vpop.f32.mrf.mxu0
        %v583 = vadd.f32 0.0, %v582
        %584 = vdwg.mxu0
        %585 = vmatpush.msra.mxu0 0.0
        %586 = vmatpush.msra.mxu0 0.0
        %587 = vmatpush.msra.mxu0 0.0
        %588 = vmatpush.msra.mxu0 0.0
        %589 = vmatpush.msra.mxu0 0.0
        %590 = vmatpush.msra.mxu0 0.0
        %591 = vmatpush.msra.mxu0 0.0
        %592 = vmatpush.msra.mxu0 0.0
        %593 = vmatpush.msra.mxu0 0.0
        %594 = vmatpush.msra.mxu0 0.0
        %595 = vmatpush.msra.mxu0 0.0
        %596 = vmatpush.msra.mxu0 %v554
        %597 = vmatpush.msra.mxu0 %v534
        %598 = vmatpush.msra.mxu0 %v532
        %599 = vmatpush.msra.mxu0 %v530
        %600 = vmatpush.msra.mxu0 %v528
        %601 = vmatmul.f32.gmra.mxu0 %v539
        %v602 = vpop.f32.mrf.mxu0
        %v603 = vadd.f32 0.0, %v602
        %604 = vmatmul.f32.gmra.mxu0 %v542
        %v605 = vpop.f32.mrf.mxu0
        %v606 = vadd.f32 0.0, %v605
        %607 = vmatmul.f32.gmra.mxu0 %v545
        %v608 = vpop.f32.mrf.mxu0
        %v609 = vadd.f32 0.0, %v608
        %610 = vmatmul.f32.gmra.mxu0 %v548
        %v611 = vpop.f32.mrf.mxu0
        %v612 = vadd.f32 0.0, %v611
        %613 = vdwg.mxu0
        %v614 = vld [vmem:[%s2] sm:$0xff]
        %v615 = vld [vmem:[%s2 + $0x8] sm:$0xff]
        %v616 = vld [vmem:[%s2 + $0x10] sm:$0xff]
        %v617 = vld [vmem:[%s2 + $0x18] sm:$0xff]
        %619 = vset.pattern.permute.xlu0 0
        %620 = vperm.xlu0 %619, %v614
        %v621 = vpop.permute.xlu0 %620
        %624 = vset.pattern.permute.xlu0 0
        %625 = vperm.xlu0 %624, %v615
        %v626 = vpop.permute.xlu0 %625
        %629 = vset.pattern.permute.xlu0 0
        %630 = vperm.xlu0 %629, %v616
        %v631 = vpop.permute.xlu0 %630
        %634 = vset.pattern.permute.xlu0 0
        %635 = vperm.xlu0 %634, %v617
        %v636 = vpop.permute.xlu0 %635
        %v638 = vmul.f32 %v574, %v621
        %v639 = vmul.f32 %v603, %v621
        %v640 = vmul.f32 %v577, %v626
        %v641 = vmul.f32 %v606, %v626
        %v642 = vmul.f32 %v580, %v631
        %v643 = vmul.f32 %v609, %v631
        %v644 = vmul.f32 %v583, %v636
        %v645 = vmul.f32 %v612, %v636
        %v646 = vld [vmem:[%s3] sm:$0xff]
        %v647 = vld [vmem:[%s3 + $0x8] sm:$0xff]
        %v648 = vld [vmem:[%s3 + $0x10] sm:$0xff]
        %v649 = vld [vmem:[%s3 + $0x18] sm:$0xff]
        %651 = vset.pattern.permute.xlu0 0
        %652 = vperm.xlu0 %651, %v646
        %v653 = vpop.permute.xlu0 %652
        %656 = vset.pattern.permute.xlu0 0
        %657 = vperm.xlu0 %656, %v647
        %v658 = vpop.permute.xlu0 %657
        %661 = vset.pattern.permute.xlu0 0
        %662 = vperm.xlu0 %661, %v648
        %v663 = vpop.permute.xlu0 %662
        %666 = vset.pattern.permute.xlu0 0
        %667 = vperm.xlu0 %666, %v649
        %v668 = vpop.permute.xlu0 %667
        %v670 = vadd.f32 %v638, %v653
        %v671 = vadd.f32 %v639, %v653
        %v672 = vadd.f32 %v640, %v658
        %v673 = vadd.f32 %v641, %v658
        %v674 = vadd.f32 %v642, %v663
        %v675 = vadd.f32 %v643, %v663
        %v676 = vadd.f32 %v644, %v668
        %v677 = vadd.f32 %v645, %v668
        %v678 = vmax.f32 %v670, 0.0
        %v679 = vmax.f32 %v671, 0.0
        %v680 = vmax.f32 %v672, 0.0
        %v681 = vmax.f32 %v673, 0.0
        %v682 = vmax.f32 %v674, 0.0
        %v683 = vmax.f32 %v675, 0.0
        %v684 = vmax.f32 %v676, 0.0
        %v685 = vmax.f32 %v677, 0.0
        %686 = vst [vmem:[%s217] sm:$0xff] %v678
        %687 = vst [vmem:[%s217 + $0x8] sm:$0xff] %v679
        %688 = vst [vmem:[%s217 + $0x10] sm:$0xff] %v680
        %689 = vst [vmem:[%s217 + $0x18] sm:$0xff] %v681
        %690 = vst [vmem:[%s217 + $0x20] sm:$0xff] %v682
        %691 = vst [vmem:[%s217 + $0x28] sm:$0xff] %v683
        %692 = vst [vmem:[%s217 + $0x30] sm:$0xff] %v684
        %693 = vst [vmem:[%s217 + $0x38] sm:$0xff] %v685
        %s694 = sand.u32 %s137, 1
        %s695 = scalar_lea.sflag [#allocation5], %s694
        %s696 = sand.u32 %s137, 1
        %s697 = smul.addr %s696, 64
        %s698 = scalar_lea.vmem [#allocation4], %s697
        // Predicated region
        $region41: #{tpu_custom_call.1} parent=39 // pred_check
          %p699 = pneg %p147
        $region42: #{tpu_custom_call.1} parent=39 // pred_check_branch
          %701 = sbr.rel (%p699) target = $region44
        $region43: #{tpu_custom_call.1} parent=39 // pred_region
          %703 = vsyncadd %s695, 0
          %s704 = smul.addr %s19, 8
          %s705 = smul.addr %s704, 8
          %s706 = scalar_lea.hbm %s5, %s705
          %s707 = sshll.u32 %s698, 4
          %s708 = int_to_ptr.vmem [resolvable:$true] %s707
          %s709 = sshll.u32 %s706, 4
          %s710 = int_to_ptr.hbm [resolvable:$true] %s709
          %715 = dma.vmem_to_hbm [thread:$0]  %s708, 1024, %s710, %s695, 256, 256, 16
        $region44: #{tpu_custom_call.1} parent=39 // pred_fallthru
          _
      $region40: #{tpu_custom_call.1} parent=5 // pred_fallthru
        _
      %p716 = scmp.le.s32.totalorder 2, %s14
      // Predicated region
      $region45: #{tpu_custom_call.1} parent=5 // pred_check
        %p717 = pneg %p716
      $region46: #{tpu_custom_call.1} parent=5 // pred_check_branch
        %719 = sbr.rel (%p717) target = $region48
      $region47: #{tpu_custom_call.1} parent=5 // pred_region
        %s720 = ssub.s32 %s14, 2
        // Predicated region
        $region49: #{tpu_custom_call.1} parent=47 // pred_check
          %p721 = pneg %p153
        $region50: #{tpu_custom_call.1} parent=47 // pred_check_branch
          %723 = sbr.rel (%p721) target = $region52
        $region51: #{tpu_custom_call.1} parent=47 // pred_region
          %s724 = sand.u32 %s138, 1
          %s725 = scalar_lea.sflag [#allocation5], %s724
          %s726 = sand.u32 %s138, 1
          %s727 = smul.addr %s726, 64
          %s728 = scalar_lea.vmem [#allocation4], %s727
          %730 = dma.done %s725, 1024
        $region52: #{tpu_custom_call.1} parent=47 // pred_fallthru
          _
      $region48: #{tpu_custom_call.1} parent=5 // pred_fallthru
        _
    $region6: #{tpu_custom_call.1} parent=1 // loop_footer
      %s18 = sadd.s32 1, %s14
    $region7: #{tpu_custom_call.1} parent=1 // loop_footer_branch
      %13 = sbr.rel target = $region3
    $region8: #{tpu_custom_call.1} parent=1 // loop_exit
      _
    %731 = vsyncpa [#allocation5], 1
    %s732 = scalar_lea.sflag [#allocation5], 1
    %733 = vsyncpa %s732, 1

</llo_original>
